<compile_context>
chip_gen: v5e
topology: v5e:2x2
jax: 0.10.0
libtpu: 0.0.40
codegen_flags: <defaults>
</compile_context>

<pallas_src>
import functools

import jax
import jax.numpy as jnp
from jax.experimental import pallas as pl
from jax.experimental.pallas import tpu as pltpu

_OUT_LANES = 128  # lane-dense output slot per core


def _vmem_budget():
    """Physical VMEM, scoped limit to request, and input/temporary budget."""
    try:
        physical = int(pltpu.get_tpu_info().vmem_capacity_bytes)
    except Exception:
        physical = 64 * 1024 * 1024          # conservative fallback (v7x per-TC)
    vmem_limit = int(physical * 0.75)        # ~25% headroom for compiler temporaries
    budget = int(physical * 0.60)            # double-buffered inputs + live f32 temps
    return physical, vmem_limit, budget


def _choose_tiling(B, C, F_, logit_sz, feat_sz, budget, max_rows_per_step=None):
    """Pick (n_split, rows_per_split, row_tile).

    n_split=2 adds a leading "parallel" grid axis so v7x megacore can run both
    halves of the batch concurrently; on 1-TC chips it is a no-cost sequential
    split.  The row tile is the largest multiple-of-8 divisor of the per-core
    rows whose double-buffered inputs plus live f32 temporaries fit the budget.
    """
    n_split = 2 if (B % 16 == 0) else 1
    rows = B // n_split

    # Per batch-row VMEM bytes: 2x-buffered inputs (raw + 2*aug + 3*aux + fm + fc +
    # label) plus f32 temporaries live at once (one (tb,C) CE slab + feature diff).
    per_row = (2 * (6 * C * logit_sz + 2 * F_ * feat_sz + 4)
               + 16 * C + 8 * F_)
    cap = max(8, budget // per_row)
    cap = min(cap, rows, 4096)
    if max_rows_per_step is not None:
        cap = min(cap, max_rows_per_step)

    tb = None
    start = cap - (cap % 8)
    for cand in range(start, 0, -8):         # largest multiple-of-8 divisor of rows
        if rows % cand == 0:
            tb = cand
            break
    if tb is None:
        # Awkward batch with no /8 divisor under the cap: a full-extent block is
        # always layout-legal.  TODO(synk): pad the batch instead if this ever
        # exceeds the VMEM budget for very large, awkward B.
        tb = rows
    return n_split, rows, tb


def cal_loss_kernel(lab_ref, raw_ref, aug_ref, aux_ref, fm_ref, fc_ref,
                    out_ref, acc_ref, *, inv_denom):
    i = pl.program_id(1)

    @pl.when(i == 0)
    def _init():
        acc_ref[...] = jnp.zeros_like(acc_ref)

    lab = lab_ref[...]                                        # (tb, 1) int32
    C = raw_ref.shape[-1]
    cls = jax.lax.broadcasted_iota(jnp.int32, (1, C), 1)      # hoisted lane iota
    onehot = cls == lab                                       # (tb, C), reused 6x

    def ce_sum(logits_2d):
        # sum_i [ m_i + log(sum_j exp(x_ij - m_i)) - x_{i, y_i} ]  (no logp tensor)
        x = logits_2d.astype(jnp.float32)
        m = jnp.max(x, axis=-1, keepdims=True)
        lse = jnp.log(jnp.sum(jnp.exp(x - m), axis=-1, keepdims=True))
        return jnp.sum(m + lse) - jnp.sum(jnp.where(onehot, x, 0.0))

    part = ce_sum(raw_ref[...])                               # (tb, C)
    for r in range(2):                                        # one replica slab at a time
        part = part + ce_sum(aug_ref[r])                      # (tb, C) view of (2,tb,C)
    for r in range(3):
        part = part + ce_sum(aux_ref[r])                      # (tb, C) view of (3,tb,C)

    # CenterLoss: MSE(reduction='sum')/B == 3*SSQ / (3*B) -> fold into same scalar.
    diff = fm_ref[...].astype(jnp.float32) - fc_ref[...].astype(jnp.float32)
    part = part + 3.0 * jnp.sum(diff * diff)

    acc_ref[...] += part                                      # VMEM accumulator

    @pl.when(i == pl.num_programs(1) - 1)
    def _finalize():
        out_ref[...] = jnp.broadcast_to(acc_ref[...] * inv_denom, out_ref.shape)


def cal_loss_pallas(y_pred_raw, y_pred_aug, y_pred_aux, y,
                    feature_matrix, feature_center_batch, *,
                    max_rows_per_step=None):
    B, C = y_pred_raw.shape
    F_ = feature_matrix.shape[1]

    # No wrapper-side label concatenation or dtype upcast: one (B,1) int32 label tile
    # serves all three cross-entropies; logits/features keep their input dtype (bf16 ok).
    lab = y.astype(jnp.int32).reshape(B, 1)
    aug3 = y_pred_aug.reshape(2, B, C)            # free reshape (contiguous)
    aux3 = y_pred_aux.reshape(3, B, C)

    _, vmem_limit, budget = _vmem_budget()
    n_split, rows, tb = _choose_tiling(
        B, C, F_, y_pred_raw.dtype.itemsize, feature_matrix.dtype.itemsize,
        budget, max_rows_per_step)
    steps = rows // tb
    grid = (n_split, steps)                       # (core-parallel, reduction) — reduction last
    inv_denom = 1.0 / (3.0 * B)

    lsz = y_pred_raw.dtype.itemsize
    fsz = feature_matrix.dtype.itemsize
    cost = pl.CostEstimate(
        flops=8 * 6 * B * C + 3 * B * F_,
        transcendentals=6 * B * C,
        bytes_accessed=lsz * 6 * B * C + fsz * 2 * B * F_ + 4 * B,
    )

    out = pl.pallas_call(
        functools.partial(cal_loss_kernel, inv_denom=inv_denom),
        out_shape=jax.ShapeDtypeStruct((1, n_split * _OUT_LANES), jnp.float32),
        grid=grid,
        in_specs=[
            pl.BlockSpec((tb, 1), lambda p, i: (p * steps + i, 0)),        # labels
            pl.BlockSpec((tb, C), lambda p, i: (p * steps + i, 0)),        # y_pred_raw
            pl.BlockSpec((2, tb, C), lambda p, i: (0, p * steps + i, 0)),  # y_pred_aug
            pl.BlockSpec((3, tb, C), lambda p, i: (0, p * steps + i, 0)),  # y_pred_aux
            pl.BlockSpec((tb, F_), lambda p, i: (p * steps + i, 0)),       # feature_matrix
            pl.BlockSpec((tb, F_), lambda p, i: (p * steps + i, 0)),       # feature_center
        ],
        out_specs=pl.BlockSpec((1, _OUT_LANES), lambda p, i: (0, p)),      # per-core slot
        scratch_shapes=[pltpu.VMEM((1, 1), jnp.float32)],                  # per-core acc
        compiler_params=pltpu.CompilerParams(
            dimension_semantics=("parallel", "arbitrary"),
            vmem_limit_bytes=vmem_limit),
        cost_estimate=cost,
    )(lab, y_pred_raw, aug3, aux3, feature_matrix, feature_center_batch)

    # Each core's partial already carries the 1/(3B) factor; just add the slots.
    return jnp.sum(out.reshape(n_split, _OUT_LANES)[:, 0])


def overall_loss_forward(output, targets):
    """OverallLoss.forward for selector='cal', kd=False, no mixup, no teacher."""
    (first, y_pred_raw, y_pred_aux, feature_matrix,
     feature_center_batch, y_pred_aug, _last) = output
    loss = cal_loss_pallas(y_pred_raw, y_pred_aug, y_pred_aux,
                           targets, feature_matrix, feature_center_batch)
    # selector == 'cal' and len(output) == 7 -> output = output[0]
    return first, loss


def _reference_loss(output, targets):
    """Pure-JAX reference (mirrors the PyTorch math) for a sanity check."""
    (_, y_pred_raw, y_pred_aux, fm, fc, y_pred_aug, _) = output
    y = targets.astype(jnp.int32)
    y_aug = jnp.concatenate([y, y], axis=0)
    y_aux = jnp.concatenate([y, y_aug], axis=0)

    def ce(logits, lab):
        logp = jax.nn.log_softmax(logits.astype(jnp.float32), axis=-1)
        return -jnp.mean(jnp.take_along_axis(logp, lab[:, None], axis=-1))

    center = jnp.sum((fm.astype(jnp.float32) - fc.astype(jnp.float32)) ** 2) / fm.shape[0]
    return (ce(y_pred_raw, y) / 3.0 + ce(y_pred_aug, y_aug) * 2.0 / 3.0
            + ce(y_pred_aux, y_aux) * 3.0 / 3.0 + center)


if __name__ == "__main__":
    def make_inputs(key, B, C, F, dtype=jnp.float32):
        k = jax.random.split(key, 7)
        first = jax.random.normal(k[0], (B, 4, 16, 16), jnp.float32)   # passthrough "output"
        y_pred_raw = jax.random.normal(k[1], (B, C), dtype)
        y_pred_aug = jax.random.normal(k[2], (2 * B, C), dtype)
        y_pred_aux = jax.random.normal(k[3], (3 * B, C), dtype)
        fm = jax.random.normal(k[4], (B, F), dtype)
        fc = jax.random.normal(k[5], (B, F), dtype)
        targets = jax.random.randint(k[6], (B,), 0, C, jnp.int32)
        return (first, y_pred_raw, y_pred_aux, fm, fc, y_pred_aug, None), targets

    # Small shapes consistent with the module's CAL forward.
    output_tuple, targets = make_inputs(jax.random.PRNGKey(0), B=2, C=8, F=32)
    out, loss = overall_loss_forward(output_tuple, targets)
    loss = jax.block_until_ready(loss)
    out = jax.block_until_ready(out)
    ref = _reference_loss(output_tuple, targets)
    assert bool(jnp.isfinite(loss)), f"Loss is not finite: {loss}"
    assert jnp.allclose(loss, ref, atol=1e-5, rtol=1e-5), (loss, ref)

    # Second check: exercises multi-step row accumulation and the 2-way core split.
    output_tuple2, targets2 = make_inputs(jax.random.PRNGKey(1), B=32, C=256, F=128)
    (_, raw2, aux2, fm2, fc2, aug2, _) = output_tuple2
    loss2 = cal_loss_pallas(raw2, aug2, aux2, targets2, fm2, fc2,
                            max_rows_per_step=8)
    loss2 = jax.block_until_ready(loss2)
    ref2 = _reference_loss(output_tuple2, targets2)
    assert bool(jnp.isfinite(loss2)), f"Loss is not finite: {loss2}"
    assert jnp.allclose(loss2, ref2, atol=1e-5, rtol=1e-5), (loss2, ref2)

    print("KERNEL_OK")
</pallas_src>

<mosaic_0001>
module attributes {stable_mosaic.version = 11 : i64} {
  func.func @cal_loss_kernel(%arg0: i32, %arg1: i32, %arg2: memref<2x1xi32, #tpu.memory_space<vmem>>, %arg3: memref<2x8xf32, #tpu.memory_space<vmem>>, %arg4: memref<2x2x8xf32, #tpu.memory_space<vmem>>, %arg5: memref<3x2x8xf32, #tpu.memory_space<vmem>>, %arg6: memref<2x32xf32, #tpu.memory_space<vmem>>, %arg7: memref<2x32xf32, #tpu.memory_space<vmem>>, %arg8: memref<1x128xf32, #tpu.memory_space<vmem>>, %arg9: memref<1x1xf32, #tpu.memory_space<vmem>>) attributes {dimension_semantics = [#tpu.dimension_semantics<parallel>, #tpu.dimension_semantics<arbitrary>], iteration_bounds = array<i64: 1, 1>, scalar_prefetch = 0 : i64, scratch_operands = 1 : i64, tpu.core_type = #tpu.core_type<tc>, window_params = [{transform_indices = @transform_0, window_bounds = array<i64: 2, 1>}, {transform_indices = @transform_1, window_bounds = array<i64: 2, 8>}, {transform_indices = @transform_2, window_bounds = array<i64: 2, 2, 8>}, {transform_indices = @transform_3, window_bounds = array<i64: 3, 2, 8>}, {transform_indices = @transform_4, window_bounds = array<i64: 2, 32>}, {transform_indices = @transform_5, window_bounds = array<i64: 2, 32>}, {transform_indices = @transform_6, window_bounds = array<i64: 1, 128>}]} {
    %c0_i32 = arith.constant 0 : i32
    %0 = arith.cmpi eq, %arg1, %c0_i32 : i32
    %1 = arith.extui %0 : i1 to i32
    %c0_i32_0 = arith.constant 0 : i32
    %2 = arith.cmpi ne, %1, %c0_i32_0 : i32
    scf.if %2 {
      %cst_58 = arith.constant 0.000000e+00 : f32
      %161 = vector.broadcast %cst_58 : f32 to vector<1x1xf32>
      %c0_59 = arith.constant 0 : index
      %c0_60 = arith.constant 0 : index
      %162 = vector.load %arg9[%c0_59, %c0_60] : memref<1x1xf32, #tpu.memory_space<vmem>>, vector<1x1xf32>
      tpu.vector_store %arg9[%c0_59, %c0_60], %161 {strides = array<i32>} : memref<1x1xf32, #tpu.memory_space<vmem>>, vector<1x1xf32>,
    } else {
    }
    %c0 = arith.constant 0 : index
    %c0_1 = arith.constant 0 : index
    %3 = vector.load %arg2[%c0, %c0_1] : memref<2x1xi32, #tpu.memory_space<vmem>>, vector<2x1xi32>
    %4 = tpu.iota {dimensions = array<i32: 1>} : vector<1x8xi32>
    %5 = vector.broadcast %4 : vector<1x8xi32> to vector<2x8xi32>
    %6 = vector.broadcast %3 : vector<2x1xi32> to vector<2x8xi32>
    %7 = arith.cmpi eq, %5, %6 : vector<2x8xi32>
    %c0_2 = arith.constant 0 : index
    %c0_3 = arith.constant 0 : index
    %8 = vector.load %arg3[%c0_2, %c0_3] : memref<2x8xf32, #tpu.memory_space<vmem>>, vector<2x8xf32>
    %cst = arith.constant dense<0xFF800000> : vector<2xf32>
    %9 = vector.multi_reduction <maximumf>, %8, %cst [1] : vector<2x8xf32> to vector<2xf32>
    %10 = vector.shape_cast %9 : vector<2xf32> to vector<2x1xf32>
    %11 = vector.broadcast %10 : vector<2x1xf32> to vector<2x8xf32>
    %12 = arith.subf %8, %11 : vector<2x8xf32>
    %13 = math.exp %12 : vector<2x8xf32>
    %cst_4 = arith.constant dense<0.000000e+00> : vector<2xf32>
    %14 = vector.multi_reduction <add>, %13, %cst_4 [1] : vector<2x8xf32> to vector<2xf32>
    %15 = vector.shape_cast %14 : vector<2xf32> to vector<2x1xf32>
    %16 = math.log %15 : vector<2x1xf32>
    %17 = arith.addf %10, %16 : vector<2x1xf32>
    %18 = vector.shape_cast %17 : vector<2x1xf32> to vector<1x2x1xf32>
    %cst_5 = arith.constant dense<0.000000e+00> : vector<1xf32>
    %19 = vector.multi_reduction <add>, %18, %cst_5 [1, 2] : vector<1x2x1xf32> to vector<1xf32>
    %20 = vector.shape_cast %19 : vector<1xf32> to vector<1x1x1xf32>
    %21 = vector.extract %20[0, 0, 0] : f32 from vector<1x1x1xf32>
    %cst_6 = arith.constant 0.000000e+00 : f32
    %22 = vector.broadcast %cst_6 : f32 to vector<2x8xf32>
    %23 = arith.select %7, %8, %22 : vector<2x8xi1>, vector<2x8xf32>
    %24 = vector.shape_cast %23 : vector<2x8xf32> to vector<1x2x8xf32>
    %cst_7 = arith.constant dense<0.000000e+00> : vector<1xf32>
    %25 = vector.multi_reduction <add>, %24, %cst_7 [1, 2] : vector<1x2x8xf32> to vector<1xf32>
    %26 = vector.shape_cast %25 : vector<1xf32> to vector<1x1x1xf32>
    %27 = vector.extract %26[0, 0, 0] : f32 from vector<1x1x1xf32>
    %28 = arith.subf %21, %27 : f32
    %c0_8 = arith.constant 0 : index
    %c0_9 = arith.constant 0 : index
    %c0_10 = arith.constant 0 : index
    %29 = vector.load %arg4[%c0_8, %c0_9, %c0_10] : memref<2x2x8xf32, #tpu.memory_space<vmem>>, vector<1x2x8xf32>
    %30 = vector.shape_cast %29 : vector<1x2x8xf32> to vector<2x8xf32>
    %cst_11 = arith.constant dense<0xFF800000> : vector<2xf32>
    %31 = vector.multi_reduction <maximumf>, %30, %cst_11 [1] : vector<2x8xf32> to vector<2xf32>
    %32 = vector.shape_cast %31 : vector<2xf32> to vector<2x1xf32>
    %33 = vector.broadcast %32 : vector<2x1xf32> to vector<2x8xf32>
    %34 = arith.subf %30, %33 : vector<2x8xf32>
    %35 = math.exp %34 : vector<2x8xf32>
    %cst_12 = arith.constant dense<0.000000e+00> : vector<2xf32>
    %36 = vector.multi_reduction <add>, %35, %cst_12 [1] : vector<2x8xf32> to vector<2xf32>
    %37 = vector.shape_cast %36 : vector<2xf32> to vector<2x1xf32>
    %38 = math.log %37 : vector<2x1xf32>
    %39 = arith.addf %32, %38 : vector<2x1xf32>
    %40 = vector.shape_cast %39 : vector<2x1xf32> to vector<1x2x1xf32>
    %cst_13 = arith.constant dense<0.000000e+00> : vector<1xf32>
    %41 = vector.multi_reduction <add>, %40, %cst_13 [1, 2] : vector<1x2x1xf32> to vector<1xf32>
    %42 = vector.shape_cast %41 : vector<1xf32> to vector<1x1x1xf32>
    %43 = vector.extract %42[0, 0, 0] : f32 from vector<1x1x1xf32>
    %cst_14 = arith.constant 0.000000e+00 : f32
    %44 = vector.broadcast %cst_14 : f32 to vector<2x8xf32>
    %45 = arith.select %7, %30, %44 : vector<2x8xi1>, vector<2x8xf32>
    %46 = vector.shape_cast %45 : vector<2x8xf32> to vector<1x2x8xf32>
    %cst_15 = arith.constant dense<0.000000e+00> : vector<1xf32>
    %47 = vector.multi_reduction <add>, %46, %cst_15 [1, 2] : vector<1x2x8xf32> to vector<1xf32>
    %48 = vector.shape_cast %47 : vector<1xf32> to vector<1x1x1xf32>
    %49 = vector.extract %48[0, 0, 0] : f32 from vector<1x1x1xf32>
    %50 = arith.subf %43, %49 : f32
    %51 = arith.addf %28, %50 : f32
    %c1 = arith.constant 1 : index
    %c0_16 = arith.constant 0 : index
    %c0_17 = arith.constant 0 : index
    %52 = vector.load %arg4[%c1, %c0_16, %c0_17] : memref<2x2x8xf32, #tpu.memory_space<vmem>>, vector<1x2x8xf32>
    %53 = vector.shape_cast %52 : vector<1x2x8xf32> to vector<2x8xf32>
    %cst_18 = arith.constant dense<0xFF800000> : vector<2xf32>
    %54 = vector.multi_reduction <maximumf>, %53, %cst_18 [1] : vector<2x8xf32> to vector<2xf32>
    %55 = vector.shape_cast %54 : vector<2xf32> to vector<2x1xf32>
    %56 = vector.broadcast %55 : vector<2x1xf32> to vector<2x8xf32>
    %57 = arith.subf %53, %56 : vector<2x8xf32>
    %58 = math.exp %57 : vector<2x8xf32>
    %cst_19 = arith.constant dense<0.000000e+00> : vector<2xf32>
    %59 = vector.multi_reduction <add>, %58, %cst_19 [1] : vector<2x8xf32> to vector<2xf32>
    %60 = vector.shape_cast %59 : vector<2xf32> to vector<2x1xf32>
    %61 = math.log %60 : vector<2x1xf32>
    %62 = arith.addf %55, %61 : vector<2x1xf32>
    %63 = vector.shape_cast %62 : vector<2x1xf32> to vector<1x2x1xf32>
    %cst_20 = arith.constant dense<0.000000e+00> : vector<1xf32>
    %64 = vector.multi_reduction <add>, %63, %cst_20 [1, 2] : vector<1x2x1xf32> to vector<1xf32>
    %65 = vector.shape_cast %64 : vector<1xf32> to vector<1x1x1xf32>
    %66 = vector.extract %65[0, 0, 0] : f32 from vector<1x1x1xf32>
    %cst_21 = arith.constant 0.000000e+00 : f32
    %67 = vector.broadcast %cst_21 : f32 to vector<2x8xf32>
    %68 = arith.select %7, %53, %67 : vector<2x8xi1>, vector<2x8xf32>
    %69 = vector.shape_cast %68 : vector<2x8xf32> to vector<1x2x8xf32>
    %cst_22 = arith.constant dense<0.000000e+00> : vector<1xf32>
    %70 = vector.multi_reduction <add>, %69, %cst_22 [1, 2] : vector<1x2x8xf32> to vector<1xf32>
    %71 = vector.shape_cast %70 : vector<1xf32> to vector<1x1x1xf32>
    %72 = vector.extract %71[0, 0, 0] : f32 from vector<1x1x1xf32>
    %73 = arith.subf %66, %72 : f32
    %74 = arith.addf %51, %73 : f32
    %c0_23 = arith.constant 0 : index
    %c0_24 = arith.constant 0 : index
    %c0_25 = arith.constant 0 : index
    %75 = vector.load %arg5[%c0_23, %c0_24, %c0_25] : memref<3x2x8xf32, #tpu.memory_space<vmem>>, vector<1x2x8xf32>
    %76 = vector.shape_cast %75 : vector<1x2x8xf32> to vector<2x8xf32>
    %cst_26 = arith.constant dense<0xFF800000> : vector<2xf32>
    %77 = vector.multi_reduction <maximumf>, %76, %cst_26 [1] : vector<2x8xf32> to vector<2xf32>
    %78 = vector.shape_cast %77 : vector<2xf32> to vector<2x1xf32>
    %79 = vector.broadcast %78 : vector<2x1xf32> to vector<2x8xf32>
    %80 = arith.subf %76, %79 : vector<2x8xf32>
    %81 = math.exp %80 : vector<2x8xf32>
    %cst_27 = arith.constant dense<0.000000e+00> : vector<2xf32>
    %82 = vector.multi_reduction <add>, %81, %cst_27 [1] : vector<2x8xf32> to vector<2xf32>
    %83 = vector.shape_cast %82 : vector<2xf32> to vector<2x1xf32>
    %84 = math.log %83 : vector<2x1xf32>
    %85 = arith.addf %78, %84 : vector<2x1xf32>
    %86 = vector.shape_cast %85 : vector<2x1xf32> to vector<1x2x1xf32>
    %cst_28 = arith.constant dense<0.000000e+00> : vector<1xf32>
    %87 = vector.multi_reduction <add>, %86, %cst_28 [1, 2] : vector<1x2x1xf32> to vector<1xf32>
    %88 = vector.shape_cast %87 : vector<1xf32> to vector<1x1x1xf32>
    %89 = vector.extract %88[0, 0, 0] : f32 from vector<1x1x1xf32>
    %cst_29 = arith.constant 0.000000e+00 : f32
    %90 = vector.broadcast %cst_29 : f32 to vector<2x8xf32>
    %91 = arith.select %7, %76, %90 : vector<2x8xi1>, vector<2x8xf32>
    %92 = vector.shape_cast %91 : vector<2x8xf32> to vector<1x2x8xf32>
    %cst_30 = arith.constant dense<0.000000e+00> : vector<1xf32>
    %93 = vector.multi_reduction <add>, %92, %cst_30 [1, 2] : vector<1x2x8xf32> to vector<1xf32>
    %94 = vector.shape_cast %93 : vector<1xf32> to vector<1x1x1xf32>
    %95 = vector.extract %94[0, 0, 0] : f32 from vector<1x1x1xf32>
    %96 = arith.subf %89, %95 : f32
    %97 = arith.addf %74, %96 : f32
    %c1_31 = arith.constant 1 : index
    %c0_32 = arith.constant 0 : index
    %c0_33 = arith.constant 0 : index
    %98 = vector.load %arg5[%c1_31, %c0_32, %c0_33] : memref<3x2x8xf32, #tpu.memory_space<vmem>>, vector<1x2x8xf32>
    %99 = vector.shape_cast %98 : vector<1x2x8xf32> to vector<2x8xf32>
    %cst_34 = arith.constant dense<0xFF800000> : vector<2xf32>
    %100 = vector.multi_reduction <maximumf>, %99, %cst_34 [1] : vector<2x8xf32> to vector<2xf32>
    %101 = vector.shape_cast %100 : vector<2xf32> to vector<2x1xf32>
    %102 = vector.broadcast %101 : vector<2x1xf32> to vector<2x8xf32>
    %103 = arith.subf %99, %102 : vector<2x8xf32>
    %104 = math.exp %103 : vector<2x8xf32>
    %cst_35 = arith.constant dense<0.000000e+00> : vector<2xf32>
    %105 = vector.multi_reduction <add>, %104, %cst_35 [1] : vector<2x8xf32> to vector<2xf32>
    %106 = vector.shape_cast %105 : vector<2xf32> to vector<2x1xf32>
    %107 = math.log %106 : vector<2x1xf32>
    %108 = arith.addf %101, %107 : vector<2x1xf32>
    %109 = vector.shape_cast %108 : vector<2x1xf32> to vector<1x2x1xf32>
    %cst_36 = arith.constant dense<0.000000e+00> : vector<1xf32>
    %110 = vector.multi_reduction <add>, %109, %cst_36 [1, 2] : vector<1x2x1xf32> to vector<1xf32>
    %111 = vector.shape_cast %110 : vector<1xf32> to vector<1x1x1xf32>
    %112 = vector.extract %111[0, 0, 0] : f32 from vector<1x1x1xf32>
    %cst_37 = arith.constant 0.000000e+00 : f32
    %113 = vector.broadcast %cst_37 : f32 to vector<2x8xf32>
    %114 = arith.select %7, %99, %113 : vector<2x8xi1>, vector<2x8xf32>
    %115 = vector.shape_cast %114 : vector<2x8xf32> to vector<1x2x8xf32>
    %cst_38 = arith.constant dense<0.000000e+00> : vector<1xf32>
    %116 = vector.multi_reduction <add>, %115, %cst_38 [1, 2] : vector<1x2x8xf32> to vector<1xf32>
    %117 = vector.shape_cast %116 : vector<1xf32> to vector<1x1x1xf32>
    %118 = vector.extract %117[0, 0, 0] : f32 from vector<1x1x1xf32>
    %119 = arith.subf %112, %118 : f32
    %120 = arith.addf %97, %119 : f32
    %c2 = arith.constant 2 : index
    %c0_39 = arith.constant 0 : index
    %c0_40 = arith.constant 0 : index
    %121 = vector.load %arg5[%c2, %c0_39, %c0_40] : memref<3x2x8xf32, #tpu.memory_space<vmem>>, vector<1x2x8xf32>
    %122 = vector.shape_cast %121 : vector<1x2x8xf32> to vector<2x8xf32>
    %cst_41 = arith.constant dense<0xFF800000> : vector<2xf32>
    %123 = vector.multi_reduction <maximumf>, %122, %cst_41 [1] : vector<2x8xf32> to vector<2xf32>
    %124 = vector.shape_cast %123 : vector<2xf32> to vector<2x1xf32>
    %125 = vector.broadcast %124 : vector<2x1xf32> to vector<2x8xf32>
    %126 = arith.subf %122, %125 : vector<2x8xf32>
    %127 = math.exp %126 : vector<2x8xf32>
    %cst_42 = arith.constant dense<0.000000e+00> : vector<2xf32>
    %128 = vector.multi_reduction <add>, %127, %cst_42 [1] : vector<2x8xf32> to vector<2xf32>
    %129 = vector.shape_cast %128 : vector<2xf32> to vector<2x1xf32>
    %130 = math.log %129 : vector<2x1xf32>
    %131 = arith.addf %124, %130 : vector<2x1xf32>
    %132 = vector.shape_cast %131 : vector<2x1xf32> to vector<1x2x1xf32>
    %cst_43 = arith.constant dense<0.000000e+00> : vector<1xf32>
    %133 = vector.multi_reduction <add>, %132, %cst_43 [1, 2] : vector<1x2x1xf32> to vector<1xf32>
    %134 = vector.shape_cast %133 : vector<1xf32> to vector<1x1x1xf32>
    %135 = vector.extract %134[0, 0, 0] : f32 from vector<1x1x1xf32>
    %cst_44 = arith.constant 0.000000e+00 : f32
    %136 = vector.broadcast %cst_44 : f32 to vector<2x8xf32>
    %137 = arith.select %7, %122, %136 : vector<2x8xi1>, vector<2x8xf32>
    %138 = vector.shape_cast %137 : vector<2x8xf32> to vector<1x2x8xf32>
    %cst_45 = arith.constant dense<0.000000e+00> : vector<1xf32>
    %139 = vector.multi_reduction <add>, %138, %cst_45 [1, 2] : vector<1x2x8xf32> to vector<1xf32>
    %140 = vector.shape_cast %139 : vector<1xf32> to vector<1x1x1xf32>
    %141 = vector.extract %140[0, 0, 0] : f32 from vector<1x1x1xf32>
    %142 = arith.subf %135, %141 : f32
    %143 = arith.addf %120, %142 : f32
    %c0_46 = arith.constant 0 : index
    %c0_47 = arith.constant 0 : index
    %144 = vector.load %arg6[%c0_46, %c0_47] : memref<2x32xf32, #tpu.memory_space<vmem>>, vector<2x32xf32>
    %c0_48 = arith.constant 0 : index
    %c0_49 = arith.constant 0 : index
    %145 = vector.load %arg7[%c0_48, %c0_49] : memref<2x32xf32, #tpu.memory_space<vmem>>, vector<2x32xf32>
    %146 = arith.subf %144, %145 : vector<2x32xf32>
    %147 = arith.mulf %146, %146 : vector<2x32xf32>
    %148 = vector.shape_cast %147 : vector<2x32xf32> to vector<1x2x32xf32>
    %cst_50 = arith.constant dense<0.000000e+00> : vector<1xf32>
    %149 = vector.multi_reduction <add>, %148, %cst_50 [1, 2] : vector<1x2x32xf32> to vector<1xf32>
    %150 = vector.shape_cast %149 : vector<1xf32> to vector<1x1x1xf32>
    %151 = vector.extract %150[0, 0, 0] : f32 from vector<1x1x1xf32>
    %cst_51 = arith.constant 3.000000e+00 : f32
    %152 = arith.mulf %cst_51, %151 : f32
    %153 = arith.addf %143, %152 : f32
    %c0_52 = arith.constant 0 : index
    %c0_53 = arith.constant 0 : index
    %154 = vector.load %arg9[%c0_52, %c0_53] : memref<1x1xf32, #tpu.memory_space<vmem>>, vector<1x1xf32>
    %155 = vector.broadcast %153 : f32 to vector<1x1xf32>
    %156 = arith.addf %154, %155 : vector<1x1xf32>
    %c0_54 = arith.constant 0 : index
    %c0_55 = arith.constant 0 : index
    %157 = vector.load %arg9[%c0_54, %c0_55] : memref<1x1xf32, #tpu.memory_space<vmem>>, vector<1x1xf32>
    tpu.vector_store %arg9[%c0_54, %c0_55], %156 {strides = array<i32>} : memref<1x1xf32, #tpu.memory_space<vmem>>, vector<1x1xf32>,
    %c0_i32_56 = arith.constant 0 : i32
    %158 = arith.cmpi eq, %arg1, %c0_i32_56 : i32
    %159 = arith.extui %158 : i1 to i32
    %c0_i32_57 = arith.constant 0 : i32
    %160 = arith.cmpi ne, %159, %c0_i32_57 : i32
    scf.if %160 {
      %c0_58 = arith.constant 0 : index
      %c0_59 = arith.constant 0 : index
      %161 = vector.load %arg9[%c0_58, %c0_59] : memref<1x1xf32, #tpu.memory_space<vmem>>, vector<1x1xf32>
      %cst_60 = arith.constant 0.166666672 : f32
      %162 = vector.broadcast %cst_60 : f32 to vector<1x1xf32>
      %163 = arith.mulf %161, %162 : vector<1x1xf32>
      %164 = vector.shape_cast %163 : vector<1x1xf32> to vector<1x1xf32>
      %165 = vector.broadcast %164 : vector<1x1xf32> to vector<1x128xf32>
      %c0_61 = arith.constant 0 : index
      %c0_62 = arith.constant 0 : index
      %166 = vector.load %arg8[%c0_61, %c0_62] : memref<1x128xf32, #tpu.memory_space<vmem>>, vector<1x128xf32>
      tpu.vector_store %arg8[%c0_61, %c0_62], %165 {strides = array<i32>} : memref<1x128xf32, #tpu.memory_space<vmem>>, vector<1x128xf32>,
    } else {
    }
    return
  }
  func.func @transform_0(%arg0: i32, %arg1: i32) -> (i32, i32) {
    %c1_i32 = arith.constant 1 : i32
    %0 = arith.muli %arg0, %c1_i32 : i32
    %1 = arith.addi %0, %arg1 : i32
    %c0_i32 = arith.constant 0 : i32
    %c0_i32_0 = arith.constant 0 : i32
    return %1, %c0_i32 : i32, i32
  }
  func.func @transform_1(%arg0: i32, %arg1: i32) -> (i32, i32) {
    %c1_i32 = arith.constant 1 : i32
    %0 = arith.muli %arg0, %c1_i32 : i32
    %1 = arith.addi %0, %arg1 : i32
    %c0_i32 = arith.constant 0 : i32
    %c0_i32_0 = arith.constant 0 : i32
    return %1, %c0_i32 : i32, i32
  }
  func.func @transform_2(%arg0: i32, %arg1: i32) -> (i32, i32, i32) {
    %c1_i32 = arith.constant 1 : i32
    %0 = arith.muli %arg0, %c1_i32 : i32
    %1 = arith.addi %0, %arg1 : i32
    %c0_i32 = arith.constant 0 : i32
    %c0_i32_0 = arith.constant 0 : i32
    %c0_i32_1 = arith.constant 0 : i32
    return %c0_i32, %1, %c0_i32_0 : i32, i32, i32
  }
  func.func @transform_3(%arg0: i32, %arg1: i32) -> (i32, i32, i32) {
    %c1_i32 = arith.constant 1 : i32
    %0 = arith.muli %arg0, %c1_i32 : i32
    %1 = arith.addi %0, %arg1 : i32
    %c0_i32 = arith.constant 0 : i32
    %c0_i32_0 = arith.constant 0 : i32
    %c0_i32_1 = arith.constant 0 : i32
    return %c0_i32, %1, %c0_i32_0 : i32, i32, i32
  }
  func.func @transform_4(%arg0: i32, %arg1: i32) -> (i32, i32) {
    %c1_i32 = arith.constant 1 : i32
    %0 = arith.muli %arg0, %c1_i32 : i32
    %1 = arith.addi %0, %arg1 : i32
    %c0_i32 = arith.constant 0 : i32
    %c0_i32_0 = arith.constant 0 : i32
    return %1, %c0_i32 : i32, i32
  }
  func.func @transform_5(%arg0: i32, %arg1: i32) -> (i32, i32) {
    %c1_i32 = arith.constant 1 : i32
    %0 = arith.muli %arg0, %c1_i32 : i32
    %1 = arith.addi %0, %arg1 : i32
    %c0_i32 = arith.constant 0 : i32
    %c0_i32_0 = arith.constant 0 : i32
    return %1, %c0_i32 : i32, i32
  }
  func.func @transform_6(%arg0: i32, %arg1: i32) -> (i32, i32) {
    %c0_i32 = arith.constant 0 : i32
    %c0_i32_0 = arith.constant 0 : i32
    return %c0_i32, %arg0 : i32, i32
  }
}

</mosaic_0001>

<llo_original>
// kernel: tpu_custom_call.1
$region0: #{tpu_custom_call.1}
  #allocation0 [shape = 'u32[]', space=smem, size = 0x4, offset = 0x4, fixed_abs, tag = 'smem constant byte address 0x4 - core index']
  #allocation1 [shape = 'u32[72,128]{1,0:T(1,128)}', space=vmem, size = 0x9000, scoped, tag = 'internal scratch']
  #allocation2 [shape = 'f32[1,1]{1,0:T(1,128)}', space=vmem, size = 0x200, scoped, tag = 'scratch operand']
  %s0 = inlined_call_operand.vmem [shape: s32[2,1], index: 0, kind: input, shape index: {}]
  %s1 = inlined_call_operand.hbm [shape: f32[2,8], index: 1, kind: input, shape index: {}]
  %s2 = inlined_call_operand.vmem [shape: f32[2,2,8], index: 2, kind: input, shape index: {}]
  %s3 = inlined_call_operand.hbm [shape: f32[3,2,8], index: 3, kind: input, shape index: {}]
  %s4 = inlined_call_operand.vmem [shape: f32[2,32], index: 4, kind: input, shape index: {}]
  %s5 = inlined_call_operand.hbm [shape: f32[2,32], index: 5, kind: input, shape index: {}]
  %s6 = inlined_call_operand.hbm [shape: f32[1,128], index: 6, kind: output, shape index: {}]
  %s7 = sld [smem:[#allocation0]]
  $region54: #{tpu_custom_call.1} parent=0
    _
  %s9 = ssub.s32 1, %s7
  %s10 = scalar_select 0, %s9, %s7
  $region1: #{tpu_custom_call.1} parent=0
    #allocation3 [shape = 'u8[1024]{0}', space=vmem, size = 0x400, scoped, tag = 'input window, operand 1, single buffered']
    #allocation4 [shape = 's32[1]{0}', space=sflag, size = 0x4, scoped, tag = 'scoped memory for tpu_custom_call.1']
    #allocation5 [shape = 's32[1]{0}', space=sflag, size = 0x4, scoped, tag = 'scoped memory for tpu_custom_call.1']
    #allocation6 [shape = 'u8[3072]{0}', space=vmem, size = 0xc00, scoped, tag = 'input window, operand 3, single buffered']
    #allocation7 [shape = 's32[1]{0}', space=sflag, size = 0x4, scoped, tag = 'scoped memory for tpu_custom_call.1']
    #allocation8 [shape = 'u8[1024]{0}', space=vmem, size = 0x400, scoped, tag = 'input window, operand 5, single buffered']
    #allocation9 [shape = 'u8[512]{0}', space=vmem, size = 0x400, scoped, tag = 'output window, operand 0, single buffered']
    %11 = vsyncpa [#allocation4], 0
    %12 = vsyncpa [#allocation7], 0
    %13 = vsyncpa [#allocation5], 0
    // Predicated region
    $region2: #{tpu_custom_call.1} parent=1 // pred_check
      _
    $region3: #{tpu_custom_call.1} parent=1 // pred_check_branch
      %15 = sbr.rel (0) target = $region5
    $region4: #{tpu_custom_call.1} parent=1 // pred_region
      %s16 = sadd.s32 0, 0
      %p17 = scmp.lt.s32.totalorder %s16, 0
      %s18 = scalar_select %p17, %s16, 0
      %s19 = smul.addr %s18, 2
      %s20 = scalar_lea.vmem %s0, %s19
      %s21 = sadd.s32 0, 0
    $region5: #{tpu_custom_call.1} parent=1 // pred_fallthru
      _
    // Predicated region
    $region6: #{tpu_custom_call.1} parent=1 // pred_check
      _
    $region7: #{tpu_custom_call.1} parent=1 // pred_check_branch
      %23 = sbr.rel (0) target = $region9
    $region8: #{tpu_custom_call.1} parent=1 // pred_region
      %s24 = sadd.s32 0, 0
      %26 = vsyncadd [#allocation4], 0
      %s27 = smul.addr %s24, 2
      %s28 = scalar_lea.hbm %s1, %s27
      %s30 = sshll.u32 %s28, 4
      %s31 = int_to_ptr.hbm [resolvable:$true] %s30
      %s32 = sshll.u32 [#allocation3], 4
      %s33 = int_to_ptr.vmem [resolvable:$true] %s32
      %35 = dma.hbm_to_vmem [thread:$0]  %s31, 32, %s33, [#allocation4]
    $region9: #{tpu_custom_call.1} parent=1 // pred_fallthru
      _
    // Predicated region
    $region10: #{tpu_custom_call.1} parent=1 // pred_check
      _
    $region11: #{tpu_custom_call.1} parent=1 // pred_check_branch
      %37 = sbr.rel (0) target = $region13
    $region12: #{tpu_custom_call.1} parent=1 // pred_region
      %s38 = sadd.s32 0, 0
      %p39 = scmp.lt.s32.totalorder %s38, 0
      %s40 = scalar_select %p39, %s38, 0
      %s41 = smul.addr %s40, 2
      %s42 = scalar_lea.vmem %s2, %s41
      %s43 = sadd.s32 0, 0
    $region13: #{tpu_custom_call.1} parent=1 // pred_fallthru
      _
    // Predicated region
    $region14: #{tpu_custom_call.1} parent=1 // pred_check
      _
    $region15: #{tpu_custom_call.1} parent=1 // pred_check_branch
      %45 = sbr.rel (0) target = $region17
    $region16: #{tpu_custom_call.1} parent=1 // pred_region
      %s46 = sadd.s32 0, 0
      %48 = vsyncadd [#allocation7], 0
      %s49 = smul.addr %s46, 2
      %s50 = scalar_lea.hbm %s3, %s49
      %s51 = sshll.u32 %s50, 4
      %s52 = int_to_ptr.hbm [resolvable:$true] %s51
      %s53 = sshll.u32 [#allocation6], 4
      %s54 = int_to_ptr.vmem [resolvable:$true] %s53
      %59 = dma.hbm_to_vmem [thread:$0]  %s52, 96, %s54, [#allocation7], 32, 32, 2
    $region17: #{tpu_custom_call.1} parent=1 // pred_fallthru
      _
    // Predicated region
    $region18: #{tpu_custom_call.1} parent=1 // pred_check
      _
    $region19: #{tpu_custom_call.1} parent=1 // pred_check_branch
      %61 = sbr.rel (0) target = $region21
    $region20: #{tpu_custom_call.1} parent=1 // pred_region
      %s62 = sadd.s32 0, 0
      %p63 = scmp.lt.s32.totalorder %s62, 0
      %s64 = scalar_select %p63, %s62, 0
      %s65 = smul.addr %s64, 2
      %s66 = scalar_lea.vmem %s4, %s65
      %s67 = sadd.s32 0, 0
    $region21: #{tpu_custom_call.1} parent=1 // pred_fallthru
      _
    // Predicated region
    $region22: #{tpu_custom_call.1} parent=1 // pred_check
      _
    $region23: #{tpu_custom_call.1} parent=1 // pred_check_branch
      %69 = sbr.rel (0) target = $region25
    $region24: #{tpu_custom_call.1} parent=1 // pred_region
      %s70 = sadd.s32 0, 0
      %72 = vsyncadd [#allocation7], 0
      %s73 = smul.addr %s70, 2
      %s74 = scalar_lea.hbm %s5, %s73
      %s76 = sshll.u32 %s74, 4
      %s77 = int_to_ptr.hbm [resolvable:$true] %s76
      %s78 = sshll.u32 [#allocation8], 4
      %s79 = int_to_ptr.vmem [resolvable:$true] %s78
      %81 = dma.hbm_to_vmem [thread:$0]  %s77, 32, %s79, [#allocation7]
    $region25: #{tpu_custom_call.1} parent=1 // pred_fallthru
      _
    // Predicated region
    $region26: #{tpu_custom_call.1} parent=1 // pred_check
      _
    $region27: #{tpu_custom_call.1} parent=1 // pred_check_branch
      %83 = sbr.rel (0) target = $region29
    $region28: #{tpu_custom_call.1} parent=1 // pred_region
      %85 = dma.done [#allocation4], 32
    $region29: #{tpu_custom_call.1} parent=1 // pred_fallthru
      _
    // Predicated region
    $region30: #{tpu_custom_call.1} parent=1 // pred_check
      _
    $region31: #{tpu_custom_call.1} parent=1 // pred_check_branch
      %87 = sbr.rel (0) target = $region33
    $region32: #{tpu_custom_call.1} parent=1 // pred_region
      %89 = dma.done [#allocation7], 96
    $region33: #{tpu_custom_call.1} parent=1 // pred_fallthru
      _
    // Predicated region
    $region34: #{tpu_custom_call.1} parent=1 // pred_check
      _
    $region35: #{tpu_custom_call.1} parent=1 // pred_check_branch
      %91 = sbr.rel (0) target = $region37
    $region36: #{tpu_custom_call.1} parent=1 // pred_region
      %93 = dma.done [#allocation7], 32
    $region37: #{tpu_custom_call.1} parent=1 // pred_fallthru
      _
    %s94 = sadd.s32 0, 0
    %p95 = scmp.lt.s32.totalorder %s94, 0
    %s96 = scalar_select %p95, %s94, 0
    %s97 = smul.addr %s96, 2
    %s98 = scalar_lea.vmem %s0, %s97
    %s99 = sadd.s32 0, 0
    %p100 = scmp.lt.s32.totalorder %s99, 0
    %s101 = scalar_select %p100, %s99, 0
    %s102 = smul.addr %s101, 2
    %s103 = scalar_lea.vmem %s2, %s102
    %s104 = sadd.s32 0, 0
    %p105 = scmp.lt.s32.totalorder %s104, 0
    %s106 = scalar_select %p105, %s104, 0
    %s107 = smul.addr %s106, 2
    %s108 = scalar_lea.vmem %s4, %s107
    %s109 = sadd.s32 0, 0
    %p110 = scmp.lt.s32.totalorder %s109, 0
    %s111 = scalar_select %p110, %s109, 0
    %s112 = smul.addr %s111, 2
    %s113 = scalar_lea.vmem %s0, %s112
    %s114 = sadd.s32 0, 0
    %s115 = sadd.s32 0, 0
    %s116 = sadd.s32 0, 0
    %p117 = scmp.lt.s32.totalorder %s116, 0
    %s118 = scalar_select %p117, %s116, 0
    %s119 = smul.addr %s118, 2
    %s120 = scalar_lea.vmem %s2, %s119
    %s121 = sadd.s32 0, 0
    %s122 = sadd.s32 0, 0
    %s123 = sadd.s32 0, 0
    %p124 = scmp.lt.s32.totalorder %s123, 0
    %s125 = scalar_select %p124, %s123, 0
    %s126 = smul.addr %s125, 2
    %s127 = scalar_lea.vmem %s4, %s126
    %s128 = sadd.s32 0, 0
    %s129 = sadd.s32 0, 0
    %p130 = scmp.eq.s32.totalorder 0, 0
    // Predicated region
    $region38: #{tpu_custom_call.1} parent=1 // pred_check
      %p131 = pneg %p130
    $region39: #{tpu_custom_call.1} parent=1 // pred_check_branch
      %133 = sbr.rel (%p131) target = $region41
    $region40: #{tpu_custom_call.1} parent=1 // pred_region
      %vm134 = vcmask 0
      %135 = vst.msk [vmem:[#allocation2] sm:$0x1] %vm134, 0.0
    $region41: #{tpu_custom_call.1} parent=1 // pred_fallthru
      _
    %v136 = vld [vmem:[%s113] sm:$0x3]
    %v137 = vlaneseq
    %v138 = vand.u32 %v137, 127
    %139 = vset.pattern.permute.xlu0 0
    %140 = vperm.xlu0 %139, %v136
    %v141 = vpop.permute.xlu0 %140
    %vm142 = vcmp.eq.s32.totalorder %v138, %v141
    %v143 = vld [vmem:[#allocation3] sm:$0x3]
    %vm144 = vcmask 58368
    %v145 = vsel %vm144, %v143, -inf
    %146 = vmax.xlane.f32.xlu0 %v145
    %v147 = vpop.xlane.xlu0 %146
    %v148 = vsub.f32 %v143, %v147
    %v149 = vmul.f32 %v148, 1.442695
    %v150 = vpow.pop %v149
    %v151 = vsel %vm144, %v150, 0.0
    %152 = vadd.xlane.f32.xlu0 %v151
    %v153 = vpop.xlane.xlu0 %152
    %v154 = vlog2.pop %v153
    %v155 = vmul.f32 %v154, 0.6931472
    %v156 = vadd.f32 %v147, %v155
    %vm157 = vcmask 1024
    %v158 = vsel %vm157, %v156, 0.0
    %159 = vadd.xlane.f32.xlu0 %v158
    %v160 = vpop.xlane.xlu0 %159
    %v161 = vrot.slane %v160, 4
    %v162 = vadd.f32 %v160, %v161
    %v163 = vrot.slane %v162, 2
    %v164 = vadd.f32 %v162, %v163
    %v165 = vrot.slane %v164, 1
    %v166 = vadd.f32 %v164, %v165
    %s167 = vtos %v166
    %v168 = vsel %vm142, %v143, 0.0
    %v169 = vsel %vm144, %v168, 0.0
    %170 = vadd.xlane.f32.xlu0 %v169
    %v171 = vpop.xlane.xlu0 %170
    %v172 = vrot.slane %v171, 4
    %v173 = vadd.f32 %v171, %v172
    %v174 = vrot.slane %v173, 2
    %v175 = vadd.f32 %v173, %v174
    %v176 = vrot.slane %v175, 1
    %v177 = vadd.f32 %v175, %v176
    %s178 = vtos %v177
    %s179 = ssub.f32 %s167, %s178
    %v180 = vld [vmem:[%s120] sm:$0x3]
    %v181 = vsel %vm144, %v180, -inf
    %182 = vmax.xlane.f32.xlu0 %v181
    %v183 = vpop.xlane.xlu0 %182
    %v184 = vsub.f32 %v180, %v183
    %v185 = vmul.f32 %v184, 1.442695
    %v186 = vpow.pop %v185
    %v187 = vsel %vm144, %v186, 0.0
    %188 = vadd.xlane.f32.xlu0 %v187
    %v189 = vpop.xlane.xlu0 %188
    %v190 = vlog2.pop %v189
    %v191 = vmul.f32 %v190, 0.6931472
    %v192 = vadd.f32 %v183, %v191
    %v193 = vsel %vm157, %v192, 0.0
    %194 = vadd.xlane.f32.xlu0 %v193
    %v195 = vpop.xlane.xlu0 %194
    %v196 = vrot.slane %v195, 4
    %v197 = vadd.f32 %v195, %v196
    %v198 = vrot.slane %v197, 2
    %v199 = vadd.f32 %v197, %v198
    %v200 = vrot.slane %v199, 1
    %v201 = vadd.f32 %v199, %v200
    %s202 = vtos %v201
    %v203 = vsel %vm142, %v180, 0.0
    %v204 = vsel %vm144, %v203, 0.0
    %205 = vadd.xlane.f32.xlu0 %v204
    %v206 = vpop.xlane.xlu0 %205
    %v207 = vrot.slane %v206, 4
    %v208 = vadd.f32 %v206, %v207
    %v209 = vrot.slane %v208, 2
    %v210 = vadd.f32 %v208, %v209
    %v211 = vrot.slane %v210, 1
    %v212 = vadd.f32 %v210, %v211
    %s213 = vtos %v212
    %s214 = ssub.f32 %s202, %s213
    %s215 = sadd.f32 %s179, %s214
    %s216 = scalar_lea.vmem %s120, 2
    %v217 = vld [vmem:[%s216] sm:$0x3]
    %v218 = vsel %vm144, %v217, -inf
    %219 = vmax.xlane.f32.xlu0 %v218
    %v220 = vpop.xlane.xlu0 %219
    %v221 = vsub.f32 %v217, %v220
    %v222 = vmul.f32 %v221, 1.442695
    %v223 = vpow.pop %v222
    %v224 = vsel %vm144, %v223, 0.0
    %225 = vadd.xlane.f32.xlu0 %v224
    %v226 = vpop.xlane.xlu0 %225
    %v227 = vlog2.pop %v226
    %v228 = vmul.f32 %v227, 0.6931472
    %v229 = vadd.f32 %v220, %v228
    %v230 = vsel %vm157, %v229, 0.0
    %231 = vadd.xlane.f32.xlu0 %v230
    %v232 = vpop.xlane.xlu0 %231
    %v233 = vrot.slane %v232, 4
    %v234 = vadd.f32 %v232, %v233
    %v235 = vrot.slane %v234, 2
    %v236 = vadd.f32 %v234, %v235
    %v237 = vrot.slane %v236, 1
    %v238 = vadd.f32 %v236, %v237
    %s239 = vtos %v238
    %v240 = vsel %vm142, %v217, 0.0
    %v241 = vsel %vm144, %v240, 0.0
    %242 = vadd.xlane.f32.xlu0 %v241
    %v243 = vpop.xlane.xlu0 %242
    %v244 = vrot.slane %v243, 4
    %v245 = vadd.f32 %v243, %v244
    %v246 = vrot.slane %v245, 2
    %v247 = vadd.f32 %v245, %v246
    %v248 = vrot.slane %v247, 1
    %v249 = vadd.f32 %v247, %v248
    %s250 = vtos %v249
    %s251 = ssub.f32 %s239, %s250
    %s252 = sadd.f32 %s215, %s251
    %v253 = vld [vmem:[#allocation6] sm:$0x3]
    %v254 = vsel %vm144, %v253, -inf
    %255 = vmax.xlane.f32.xlu0 %v254
    %v256 = vpop.xlane.xlu0 %255
    %v257 = vsub.f32 %v253, %v256
    %v258 = vmul.f32 %v257, 1.442695
    %v259 = vpow.pop %v258
    %v260 = vsel %vm144, %v259, 0.0
    %261 = vadd.xlane.f32.xlu0 %v260
    %v262 = vpop.xlane.xlu0 %261
    %v263 = vlog2.pop %v262
    %v264 = vmul.f32 %v263, 0.6931472
    %v265 = vadd.f32 %v256, %v264
    %v266 = vsel %vm157, %v265, 0.0
    %267 = vadd.xlane.f32.xlu0 %v266
    %v268 = vpop.xlane.xlu0 %267
    %v269 = vrot.slane %v268, 4
    %v270 = vadd.f32 %v268, %v269
    %v271 = vrot.slane %v270, 2
    %v272 = vadd.f32 %v270, %v271
    %v273 = vrot.slane %v272, 1
    %v274 = vadd.f32 %v272, %v273
    %s275 = vtos %v274
    %v276 = vsel %vm142, %v253, 0.0
    %v277 = vsel %vm144, %v276, 0.0
    %278 = vadd.xlane.f32.xlu0 %v277
    %v279 = vpop.xlane.xlu0 %278
    %v280 = vrot.slane %v279, 4
    %v281 = vadd.f32 %v279, %v280
    %v282 = vrot.slane %v281, 2
    %v283 = vadd.f32 %v281, %v282
    %v284 = vrot.slane %v283, 1
    %v285 = vadd.f32 %v283, %v284
    %s286 = vtos %v285
    %s287 = ssub.f32 %s275, %s286
    %s288 = sadd.f32 %s252, %s287
    %s289 = scalar_lea.vmem [#allocation6], 2
    %v290 = vld [vmem:[%s289] sm:$0x3]
    %v291 = vsel %vm144, %v290, -inf
    %292 = vmax.xlane.f32.xlu0 %v291
    %v293 = vpop.xlane.xlu0 %292
    %v294 = vsub.f32 %v290, %v293
    %v295 = vmul.f32 %v294, 1.442695
    %v296 = vpow.pop %v295
    %v297 = vsel %vm144, %v296, 0.0
    %298 = vadd.xlane.f32.xlu0 %v297
    %v299 = vpop.xlane.xlu0 %298
    %v300 = vlog2.pop %v299
    %v301 = vmul.f32 %v300, 0.6931472
    %v302 = vadd.f32 %v293, %v301
    %v303 = vsel %vm157, %v302, 0.0
    %304 = vadd.xlane.f32.xlu0 %v303
    %v305 = vpop.xlane.xlu0 %304
    %v306 = vrot.slane %v305, 4
    %v307 = vadd.f32 %v305, %v306
    %v308 = vrot.slane %v307, 2
    %v309 = vadd.f32 %v307, %v308
    %v310 = vrot.slane %v309, 1
    %v311 = vadd.f32 %v309, %v310
    %s312 = vtos %v311
    %v313 = vsel %vm142, %v290, 0.0
    %v314 = vsel %vm144, %v313, 0.0
    %315 = vadd.xlane.f32.xlu0 %v314
    %v316 = vpop.xlane.xlu0 %315
    %v317 = vrot.slane %v316, 4
    %v318 = vadd.f32 %v316, %v317
    %v319 = vrot.slane %v318, 2
    %v320 = vadd.f32 %v318, %v319
    %v321 = vrot.slane %v320, 1
    %v322 = vadd.f32 %v320, %v321
    %s323 = vtos %v322
    %s324 = ssub.f32 %s312, %s323
    %s325 = sadd.f32 %s288, %s324
    %s326 = scalar_lea.vmem [#allocation6], 4
    %v327 = vld [vmem:[%s326] sm:$0x3]
    %v328 = vsel %vm144, %v327, -inf
    %329 = vmax.xlane.f32.xlu0 %v328
    %v330 = vpop.xlane.xlu0 %329
    %v331 = vsub.f32 %v327, %v330
    %v332 = vmul.f32 %v331, 1.442695
    %v333 = vpow.pop %v332
    %v334 = vsel %vm144, %v333, 0.0
    %335 = vadd.xlane.f32.xlu0 %v334
    %v336 = vpop.xlane.xlu0 %335
    %v337 = vlog2.pop %v336
    %v338 = vmul.f32 %v337, 0.6931472
    %v339 = vadd.f32 %v330, %v338
    %v340 = vsel %vm157, %v339, 0.0
    %341 = vadd.xlane.f32.xlu0 %v340
    %v342 = vpop.xlane.xlu0 %341
    %v343 = vrot.slane %v342, 4
    %v344 = vadd.f32 %v342, %v343
    %v345 = vrot.slane %v344, 2
    %v346 = vadd.f32 %v344, %v345
    %v347 = vrot.slane %v346, 1
    %v348 = vadd.f32 %v346, %v347
    %s349 = vtos %v348
    %v350 = vsel %vm142, %v327, 0.0
    %v351 = vsel %vm144, %v350, 0.0
    %352 = vadd.xlane.f32.xlu0 %v351
    %v353 = vpop.xlane.xlu0 %352
    %v354 = vrot.slane %v353, 4
    %v355 = vadd.f32 %v353, %v354
    %v356 = vrot.slane %v355, 2
    %v357 = vadd.f32 %v355, %v356
    %v358 = vrot.slane %v357, 1
    %v359 = vadd.f32 %v357, %v358
    %s360 = vtos %v359
    %s361 = ssub.f32 %s349, %s360
    %s362 = sadd.f32 %s325, %s361
    %v363 = vld [vmem:[%s127] sm:$0x3]
    %v364 = vld [vmem:[#allocation8] sm:$0x3]
    %v365 = vsub.f32 %v363, %v364
    %v366 = vmul.f32 %v365, %v365
    %vm367 = vcmask 254976
    %v368 = vsel %vm367, %v366, 0.0
    %369 = vadd.xlane.f32.xlu0 %v368
    %v370 = vpop.xlane.xlu0 %369
    %v371 = vrot.slane %v370, 4
    %v372 = vadd.f32 %v370, %v371
    %v373 = vrot.slane %v372, 2
    %v374 = vadd.f32 %v372, %v373
    %v375 = vrot.slane %v374, 1
    %v376 = vadd.f32 %v374, %v375
    %s377 = vtos %v376
    %s378 = smul.f32 %s377, 3.0
    %s379 = sadd.f32 %s362, %s378
    %v380 = vld [vmem:[#allocation2] sm:$0x1]
    %v381 = vstv %s379
    %v382 = vadd.f32 %v380, %v381
    %vm383 = vcmask 0
    %384 = vst.msk [vmem:[#allocation2] sm:$0x1] %vm383, %v382
    // Predicated region
    $region42: #{tpu_custom_call.1} parent=1 // pred_check
      %p385 = pneg %p130
    $region43: #{tpu_custom_call.1} parent=1 // pred_check_branch
      %387 = sbr.rel (%p385) target = $region45
    $region44: #{tpu_custom_call.1} parent=1 // pred_region
      %v388 = vld [vmem:[#allocation2] sm:$0x1]
      %v389 = vmul.f32 %v388, 0.16666667
      %391 = vset.pattern.permute.xlu0 0
      %392 = vperm.xlu0 %391, %v389
      %v393 = vpop.permute.xlu0 %392
      %v395 = vperm.slane %v393, 0
      %396 = vst [vmem:[#allocation9] sm:$0x1] %v395
    $region45: #{tpu_custom_call.1} parent=1 // pred_fallthru
      _
    // Predicated region
    $region46: #{tpu_custom_call.1} parent=1 // pred_check
      _
    $region47: #{tpu_custom_call.1} parent=1 // pred_check_branch
      %398 = sbr.rel (0) target = $region49
    $region48: #{tpu_custom_call.1} parent=1 // pred_region
      %400 = vsyncadd [#allocation5], 0
      %s402 = sshll.u32 [#allocation9], 4
      %s403 = int_to_ptr.vmem [resolvable:$true] %s402
      %s404 = sshll.u32 %s6, 4
      %s405 = int_to_ptr.hbm [resolvable:$true] %s404
      %407 = dma.vmem_to_hbm [thread:$0]  %s403, 16, %s405, [#allocation5]
    $region49: #{tpu_custom_call.1} parent=1 // pred_fallthru
      _
    // Predicated region
    $region50: #{tpu_custom_call.1} parent=1 // pred_check
      _
    $region51: #{tpu_custom_call.1} parent=1 // pred_check_branch
      %409 = sbr.rel (0) target = $region53
    $region52: #{tpu_custom_call.1} parent=1 // pred_region
      %411 = dma.done [#allocation5], 16
    $region53: #{tpu_custom_call.1} parent=1 // pred_fallthru
      _
    %412 = vsyncpa [#allocation4], 1
    %413 = vsyncpa [#allocation7], 1
    %414 = vsyncpa [#allocation5], 1

</llo_original>
